<compile_context>
chip_gen: v5e
topology: v5e:2x2
jax: 0.10.0
libtpu: 0.0.40
codegen_flags: <defaults>
</compile_context>

<pallas_src>
import functools

import jax
import jax.numpy as jnp
from jax import lax
from jax.experimental import pallas as pl
from jax.experimental.pallas import tpu as pltpu

KSIZE = 7                           # first conv kernel size (fixed by module)
_LEFT = 128                         # lane-aligned left margin in xpad scratch
_VMEM_BUDGET = 24 * 1024 * 1024     # per-step working-set target (all chips)
_VMEM_LIMIT = 48 * 1024 * 1024      # scoped VMEM limit (< v7x 64 MiB physical)


def _round_up(a, b):
    return (a + b - 1) // b * b


def _default_target_k():
    """MXU contraction target: 128 on v5e (4x128^2 MXU), 256 on v6e/v7x."""
    try:
        kind = jax.devices()[0].device_kind.lower()
        if "v5 lite" in kind or "v5e" in kind or "v5lite" in kind:
            return 128
    except Exception:
        pass
    return 256


def _residual_unit_kernel(x_ref, halo_ref, w1_ref, b1_ref, w2_ref, b2_ref,
                          out_ref, xpad_ref, *col_scratch,
                          dilation, groups, cp, n_mm):
    """One (batch, time-tile) grid step.

    x_ref   : (1, C, Tt)             streamed input tile
    halo_ref: (1, C, 2*pad)          [left halo | right halo] (reflect applied)
    w1_ref  : (KSIZE, O, C)          multi-tap path        (groups == 1)
              (n_mm, O, groups*cp)   grouped im2col path   (groups > 1)
    b1_ref  : (O, 1) f32
    w2_ref  : (O, C)                 pointwise (k=1) conv weights
    b2_ref  : (O, 1) f32
    out_ref : (1, O, Tt)
    xpad_ref: (C, _LEFT + Tt + 128)  VMEM window with halos spliced in
    col_scratch: optional (groups*cp, Tt) im2col slab (groups > 1 only)
    """
    C, Tt = x_ref.shape[1], x_ref.shape[2]
    pad = 3 * dilation
    base = _LEFT - pad                        # window column of tap 0

    # ---- splice [left halo | centre tile | right halo] into VMEM ------------
    xpad_ref[:, _LEFT:_LEFT + Tt] = x_ref[0]            # lane-aligned bulk store
    halo = halo_ref[0]                                  # (C, 2*pad)
    xpad_ref[:, base:_LEFT] = halo[:, :pad]
    xpad_ref[:, _LEFT + Tt:_LEFT + Tt + pad] = halo[:, pad:]

    b1 = b1_ref[...].astype(jnp.float32)                # (O, 1)

    # ---- dilated conv, kernel size 7 ----------------------------------------
    if groups == 1:
        # Large-C path: 7 shifted (O,C) x (C,Tt) MXU pushes, bias rides ReLU.
        acc = jnp.dot(w1_ref[0], xpad_ref[:, base:base + Tt],
                      preferred_element_type=jnp.float32)
        for k in range(1, KSIZE):
            off = base + k * dilation
            acc = acc + jnp.dot(w1_ref[k], xpad_ref[:, off:off + Tt],
                                preferred_element_type=jnp.float32)
    else:
        # Grouped im2col: fuse `groups` taps per matmul (contraction groups*cp).
        col_ref = col_scratch[0]
        if cp > C:
            # Channel-padding rows must stay finite (their weights are zero).
            for j in range(groups):
                col_ref[j * cp + C:(j + 1) * cp, :] = jnp.zeros(
                    (cp - C, Tt), col_ref.dtype)
        acc = None
        for m in range(n_mm):
            r = min(groups, KSIZE - m * groups)          # taps in this group
            for j in range(r):
                off = base + (m * groups + j) * dilation
                col_ref[j * cp:j * cp + C, :] = xpad_ref[:, off:off + Tt]
            used = r * cp
            part = jnp.dot(w1_ref[m][:, :used], col_ref[:used, :],
                           preferred_element_type=jnp.float32)
            acc = part if acc is None else acc + part

    # ---- ReLU (bias folded in) -> pointwise conv -> ELU -> residual ---------
    h = jnp.maximum(acc + b1, 0.0)
    y = jnp.dot(w2_ref[...], h.astype(w2_ref.dtype),
                preferred_element_type=jnp.float32)
    y = y + b2_ref[...].astype(jnp.float32)
    y = jnp.where(y > 0.0, y, jnp.exp(jnp.minimum(y, 0.0)) - 1.0)  # ELU(alpha=1)

    out_ref[0] = (x_ref[0].astype(jnp.float32) + y).astype(out_ref.dtype)


def residual_unit(x, w1, b1, w2, b2, dilation, *,
                  target_k=None, groups=None, t_tile=None):
    """x: (B, C, T). w1: (O, C, 7). b1: (O,). w2: (O, C) or (O, C, 1). b2: (O,).

    Returns (B, O, T) in x.dtype.  Pass bf16 x / w1 / w2 to halve HBM traffic;
    accumulation stays f32 inside the kernel.
    """
    B, C, T = x.shape
    O = w1.shape[0]
    assert O == C, "residual add requires in_channels == out_channels"
    assert w1.shape == (O, C, KSIZE)
    pad = 3 * dilation
    assert 0 < pad < T, "reflect padding requires 3*dilation < T"
    assert pad <= _LEFT, "dilation too large for the in-kernel halo margin"

    if w2.ndim == 3:                 # torch Conv1d(kernel_size=1) weight (O,C,1)
        w2 = w2[:, :, 0]

    dsz = jnp.dtype(x.dtype).itemsize
    wsz = jnp.dtype(w1.dtype).itemsize
    sub = 16 if dsz == 2 else 8                       # sublane packing
    cp = _round_up(C, sub)

    if groups is None:
        tk = _default_target_k() if target_k is None else target_k
        groups = max(1, min(KSIZE, tk // cp))
    n_mm = -(-KSIZE // groups)                        # ceil(KSIZE / groups)

    # ---- pick the time tile so the per-step working set fits VMEM -----------
    def est_vmem(tt):
        b = 2 * C * tt * dsz + 2 * O * tt * dsz           # in/out double buffers
        b += 2 * 2 * pad * C * dsz                        # halo double buffer
        w1_elems = (n_mm * O * groups * cp) if groups > 1 else (KSIZE * O * C)
        b += 2 * w1_elems * wsz + 2 * O * C * wsz         # weights (2 buffers)
        b += C * (_LEFT + tt + 128) * dsz                 # xpad scratch
        if groups > 1:
            b += groups * cp * tt * dsz                   # im2col slab
        b += 3 * O * tt * 4                               # f32 acc/h/y temps
        return b

    if t_tile is None:
        tt = 128
        for cand in (2048, 1024, 512, 256, 128):
            if est_vmem(cand) <= _VMEM_BUDGET:
                tt = cand
                break
    else:
        assert t_tile % 128 == 0, "t_tile must be a multiple of 128"
        tt = t_tile

    if T <= tt:
        t_blk, n_t = T, 1
    else:
        t_blk, n_t = tt, pl.cdiv(T, tt)
    te = n_t * t_blk

    # ---- halo gather (reflect applied at the true signal edges) -------------
    starts = jnp.arange(n_t) * t_blk
    li = starts[:, None] - pad + jnp.arange(pad)[None, :]       # left halo cols
    ri = starts[:, None] + t_blk + jnp.arange(pad)[None, :]     # right halo cols
    idx = jnp.concatenate([li, ri], axis=1)                     # (n_t, 2*pad)
    idx = jnp.where(idx < 0, -idx, idx)                         # left reflect
    idx = jnp.where(idx > T - 1, 2 * (T - 1) - idx, idx)        # right reflect
    idx = jnp.clip(idx, 0, T - 1)          # cols feeding only discarded outputs
    halos = jnp.take(x, idx.reshape(-1), axis=2)                # (B, C, n_t*2p)
    halos = halos.reshape(B, C, n_t, 2 * pad).transpose(0, 2, 1, 3)
    halos = halos.reshape(B * n_t, C, 2 * pad)

    # ---- extend x to a tile multiple (tail keeps the true reflect values) ---
    if te > T:
        jtail = jnp.arange(T, te)
        jtail = jnp.clip(jnp.where(jtail > T - 1, 2 * (T - 1) - jtail, jtail),
                         0, T - 1)
        xe = jnp.concatenate([x, jnp.take(x, jtail, axis=2)], axis=2)
    else:
        xe = x

    # ---- weight packing ------------------------------------------------------
    if groups == 1:
        # (O, C, 7) -> (7, O, C): taps on the untiled leading axis, C on lanes.
        w1_k = jnp.transpose(w1, (2, 0, 1))
        w1_spec = pl.BlockSpec((KSIZE, O, C), lambda b, t: (0, 0, 0))
    else:
        # (O, C, 7) -> (n_mm, O, groups*cp), zero-filled pad rows / missing taps.
        w1_k = jnp.zeros((n_mm, O, groups * cp), dtype=w1.dtype)
        for m in range(n_mm):
            for j in range(min(groups, KSIZE - m * groups)):
                k = m * groups + j
                w1_k = w1_k.at[m, :, j * cp:j * cp + C].set(w1[:, :, k])
        w1_spec = pl.BlockSpec((n_mm, O, groups * cp), lambda b, t: (0, 0, 0))

    b1_2d = b1.reshape(O, 1).astype(jnp.float32)
    b2_2d = b2.reshape(O, 1).astype(jnp.float32)

    scratch_shapes = [pltpu.VMEM((C, _LEFT + t_blk + 128), x.dtype)]
    if groups > 1:
        scratch_shapes.append(pltpu.VMEM((groups * cp, t_blk), x.dtype))

    kernel = functools.partial(_residual_unit_kernel, dilation=dilation,
                               groups=groups, cp=cp, n_mm=n_mm)

    cost = pl.CostEstimate(
        flops=2 * B * te * C * O * (KSIZE + 1),
        transcendentals=B * O * te,
        bytes_accessed=(2 * B * C * te + B * O * te) * dsz
                       + (KSIZE + 1) * O * C * wsz)

    out = pl.pallas_call(
        kernel,
        out_shape=jax.ShapeDtypeStruct((B, O, te), x.dtype),
        grid_spec=pltpu.PrefetchScalarGridSpec(
            num_scalar_prefetch=0,
            grid=(B, n_t),
            in_specs=[
                pl.BlockSpec((1, C, t_blk), lambda b, t: (b, 0, t)),
                pl.BlockSpec((1, C, 2 * pad), lambda b, t: (b * n_t + t, 0, 0)),
                w1_spec,
                pl.BlockSpec((O, 1), lambda b, t: (0, 0)),
                pl.BlockSpec((O, C), lambda b, t: (0, 0)),
                pl.BlockSpec((O, 1), lambda b, t: (0, 0)),
            ],
            out_specs=pl.BlockSpec((1, O, t_blk), lambda b, t: (b, 0, t)),
            scratch_shapes=scratch_shapes,
        ),
        compiler_params=pltpu.CompilerParams(
            dimension_semantics=("parallel", "parallel"),
            vmem_limit_bytes=_VMEM_LIMIT),
        cost_estimate=cost,
    )(xe, halos, w1_k, b1_2d, w2, b2_2d)

    return out[:, :, :T] if te > T else out


def _reference(x, w1, b1, w2, b2, dilation):
    """Pure-JAX reference mirroring the PyTorch module."""
    pad = dilation * 3
    xpad = jnp.pad(x, ((0, 0), (0, 0), (pad, pad)), mode="reflect")
    dn = ("NCH", "OIH", "NCH")
    h = lax.conv_general_dilated(xpad, w1, window_strides=(1,),
                                 padding="VALID", rhs_dilation=(dilation,),
                                 dimension_numbers=dn)
    h = h + b1[None, :, None]
    h = jnp.maximum(h, 0.0)
    y = lax.conv_general_dilated(h, w2[:, :, None], window_strides=(1,),
                                 padding="VALID", dimension_numbers=dn)
    y = y + b2[None, :, None]
    y = jnp.where(y > 0, y, jnp.expm1(y))
    return x + y


if __name__ == "__main__":
    key = jax.random.PRNGKey(0)
    kx, kw1, kb1, kw2, kb2, kx2 = jax.random.split(key, 6)

    # --- small shapes consistent with the module: B=2, C=4, T=16, dilation=2 -
    B, C, T, dilation = 2, 4, 16, 2
    x = jax.random.normal(kx, (B, C, T), dtype=jnp.float32)
    w1 = jax.random.normal(kw1, (C, C, KSIZE), dtype=jnp.float32) * 0.3
    b1 = jax.random.normal(kb1, (C,), dtype=jnp.float32) * 0.1
    w2 = jax.random.normal(kw2, (C, C), dtype=jnp.float32) * 0.3
    b2 = jax.random.normal(kb2, (C,), dtype=jnp.float32) * 0.1

    ref = _reference(x, w1, b1, w2, b2, dilation)

    # grouped im2col (tap-fused) path, single time tile.
    out = jax.block_until_ready(residual_unit(x, w1, b1, w2, b2, dilation))
    assert out.shape == (B, C, T)
    assert jnp.allclose(out, ref, atol=1e-4, rtol=1e-4), "fused path mismatch"

    # multi-tap (large-C weight layout) path.
    out_mt = jax.block_until_ready(
        residual_unit(x, w1, b1, w2, b2, dilation, groups=1))
    assert jnp.allclose(out_mt, ref, atol=1e-4, rtol=1e-4), "multi-tap mismatch"

    # time-tiled path with halos and a ragged tail (T not a tile multiple).
    B2, C2, T2, dil2 = 1, 8, 300, 3
    x2 = jax.random.normal(kx2, (B2, C2, T2), dtype=jnp.float32)
    w1_2 = jax.random.normal(kw1, (C2, C2, KSIZE), dtype=jnp.float32) * 0.2
    b1_2 = jax.random.normal(kb1, (C2,), dtype=jnp.float32) * 0.1
    w2_2 = jax.random.normal(kw2, (C2, C2), dtype=jnp.float32) * 0.2
    b2_2 = jax.random.normal(kb2, (C2,), dtype=jnp.float32) * 0.1
    ref2 = _reference(x2, w1_2, b1_2, w2_2, b2_2, dil2)
    out2 = jax.block_until_ready(
        residual_unit(x2, w1_2, b1_2, w2_2, b2_2, dil2, t_tile=128))
    assert out2.shape == (B2, C2, T2)
    assert jnp.allclose(out2, ref2, atol=1e-4, rtol=1e-4), "tiled path mismatch"

    # bf16 streaming (halved HBM traffic), f32 accumulation inside the kernel.
    xb, w1b, w2b = (a.astype(jnp.bfloat16) for a in (x, w1, w2))
    out_bf = jax.block_until_ready(residual_unit(xb, w1b, b1, w2b, b2, dilation))
    ref_bf = _reference(xb.astype(jnp.float32), w1b.astype(jnp.float32), b1,
                        w2b.astype(jnp.float32), b2, dilation)
    assert out_bf.dtype == jnp.bfloat16
    assert jnp.allclose(out_bf.astype(jnp.float32), ref_bf,
                        atol=5e-2, rtol=5e-2), "bf16 path mismatch"

    print("KERNEL_OK")
</pallas_src>

<mosaic_0001>
module attributes {stable_mosaic.version = 11 : i64} {
  func.func @_residual_unit_kernel(%arg0: i32, %arg1: i32, %arg2: memref<1x4x16xf32, #tpu.memory_space<vmem>>, %arg3: memref<1x4x12xf32, #tpu.memory_space<vmem>>, %arg4: memref<1x4x56xf32, #tpu.memory_space<vmem>>, %arg5: memref<4x1xf32, #tpu.memory_space<vmem>>, %arg6: memref<4x4xf32, #tpu.memory_space<vmem>>, %arg7: memref<4x1xf32, #tpu.memory_space<vmem>>, %arg8: memref<1x4x16xf32, #tpu.memory_space<vmem>>, %arg9: memref<4x272xf32, #tpu.memory_space<vmem>>, %arg10: memref<56x16xf32, #tpu.memory_space<vmem>>) attributes {dimension_semantics = [#tpu.dimension_semantics<parallel>, #tpu.dimension_semantics<parallel>], iteration_bounds = array<i64: 2, 1>, scalar_prefetch = 0 : i64, scratch_operands = 2 : i64, tpu.core_type = #tpu.core_type<tc>, window_params = [{transform_indices = @transform_0, window_bounds = array<i64: 1, 4, 16>}, {transform_indices = @transform_1, window_bounds = array<i64: 1, 4, 12>}, {pipeline_mode = #tpu.pipeline_mode<synchronous>, transform_indices = @transform_2, window_bounds = array<i64: 1, 4, 56>}, {pipeline_mode = #tpu.pipeline_mode<synchronous>, transform_indices = @transform_3, window_bounds = array<i64: 4, 1>}, {pipeline_mode = #tpu.pipeline_mode<synchronous>, transform_indices = @transform_4, window_bounds = array<i64: 4, 4>}, {pipeline_mode = #tpu.pipeline_mode<synchronous>, transform_indices = @transform_5, window_bounds = array<i64: 4, 1>}, {transform_indices = @transform_6, window_bounds = array<i64: 1, 4, 16>}]} {
    %c0 = arith.constant 0 : index
    %c0_0 = arith.constant 0 : index
    %c0_1 = arith.constant 0 : index
    %0 = vector.load %arg2[%c0, %c0_0, %c0_1] : memref<1x4x16xf32, #tpu.memory_space<vmem>>, vector<1x4x16xf32>
    %1 = vector.shape_cast %0 : vector<1x4x16xf32> to vector<4x16xf32>
    %c0_2 = arith.constant 0 : index
    %c128 = arith.constant 128 : index
    %2 = vector.load %arg9[%c0_2, %c128] : memref<4x272xf32, #tpu.memory_space<vmem>>, vector<4x16xf32>
    tpu.vector_store %arg9[%c0_2, %c128], %1 {strides = array<i32>} : memref<4x272xf32, #tpu.memory_space<vmem>>, vector<4x16xf32>,
    %c0_3 = arith.constant 0 : index
    %c0_4 = arith.constant 0 : index
    %c0_5 = arith.constant 0 : index
    %3 = vector.load %arg3[%c0_3, %c0_4, %c0_5] : memref<1x4x12xf32, #tpu.memory_space<vmem>>, vector<1x4x12xf32>
    %4 = vector.shape_cast %3 : vector<1x4x12xf32> to vector<4x12xf32>
    %5 = vector.extract_strided_slice %4 {offsets = [0, 0], sizes = [4, 6], strides = [1, 1]} : vector<4x12xf32> to vector<4x6xf32>
    %c0_6 = arith.constant 0 : index
    %c122 = arith.constant 122 : index
    %6 = vector.load %arg9[%c0_6, %c122] : memref<4x272xf32, #tpu.memory_space<vmem>>, vector<4x6xf32>
    tpu.vector_store %arg9[%c0_6, %c122], %5 {strides = array<i32>} : memref<4x272xf32, #tpu.memory_space<vmem>>, vector<4x6xf32>,
    %7 = vector.extract_strided_slice %4 {offsets = [0, 6], sizes = [4, 6], strides = [1, 1]} : vector<4x12xf32> to vector<4x6xf32>
    %c0_7 = arith.constant 0 : index
    %c144 = arith.constant 144 : index
    %8 = vector.load %arg9[%c0_7, %c144] : memref<4x272xf32, #tpu.memory_space<vmem>>, vector<4x6xf32>
    tpu.vector_store %arg9[%c0_7, %c144], %7 {strides = array<i32>} : memref<4x272xf32, #tpu.memory_space<vmem>>, vector<4x6xf32>,
    %c0_8 = arith.constant 0 : index
    %c0_9 = arith.constant 0 : index
    %9 = vector.load %arg5[%c0_8, %c0_9] : memref<4x1xf32, #tpu.memory_space<vmem>>, vector<4x1xf32>
    %cst = arith.constant 0.000000e+00 : f32
    %10 = vector.broadcast %cst : f32 to vector<4x16xf32>
    %c4 = arith.constant 4 : index
    %c0_10 = arith.constant 0 : index
    %11 = vector.load %arg10[%c4, %c0_10] : memref<56x16xf32, #tpu.memory_space<vmem>>, vector<4x16xf32>
    tpu.vector_store %arg10[%c4, %c0_10], %10 {strides = array<i32>} : memref<56x16xf32, #tpu.memory_space<vmem>>, vector<4x16xf32>,
    %cst_11 = arith.constant 0.000000e+00 : f32
    %12 = vector.broadcast %cst_11 : f32 to vector<4x16xf32>
    %c12 = arith.constant 12 : index
    %c0_12 = arith.constant 0 : index
    %13 = vector.load %arg10[%c12, %c0_12] : memref<56x16xf32, #tpu.memory_space<vmem>>, vector<4x16xf32>
    tpu.vector_store %arg10[%c12, %c0_12], %12 {strides = array<i32>} : memref<56x16xf32, #tpu.memory_space<vmem>>, vector<4x16xf32>,
    %cst_13 = arith.constant 0.000000e+00 : f32
    %14 = vector.broadcast %cst_13 : f32 to vector<4x16xf32>
    %c20 = arith.constant 20 : index
    %c0_14 = arith.constant 0 : index
    %15 = vector.load %arg10[%c20, %c0_14] : memref<56x16xf32, #tpu.memory_space<vmem>>, vector<4x16xf32>
    tpu.vector_store %arg10[%c20, %c0_14], %14 {strides = array<i32>} : memref<56x16xf32, #tpu.memory_space<vmem>>, vector<4x16xf32>,
    %cst_15 = arith.constant 0.000000e+00 : f32
    %16 = vector.broadcast %cst_15 : f32 to vector<4x16xf32>
    %c28 = arith.constant 28 : index
    %c0_16 = arith.constant 0 : index
    %17 = vector.load %arg10[%c28, %c0_16] : memref<56x16xf32, #tpu.memory_space<vmem>>, vector<4x16xf32>
    tpu.vector_store %arg10[%c28, %c0_16], %16 {strides = array<i32>} : memref<56x16xf32, #tpu.memory_space<vmem>>, vector<4x16xf32>,
    %cst_17 = arith.constant 0.000000e+00 : f32
    %18 = vector.broadcast %cst_17 : f32 to vector<4x16xf32>
    %c36 = arith.constant 36 : index
    %c0_18 = arith.constant 0 : index
    %19 = vector.load %arg10[%c36, %c0_18] : memref<56x16xf32, #tpu.memory_space<vmem>>, vector<4x16xf32>
    tpu.vector_store %arg10[%c36, %c0_18], %18 {strides = array<i32>} : memref<56x16xf32, #tpu.memory_space<vmem>>, vector<4x16xf32>,
    %cst_19 = arith.constant 0.000000e+00 : f32
    %20 = vector.broadcast %cst_19 : f32 to vector<4x16xf32>
    %c44 = arith.constant 44 : index
    %c0_20 = arith.constant 0 : index
    %21 = vector.load %arg10[%c44, %c0_20] : memref<56x16xf32, #tpu.memory_space<vmem>>, vector<4x16xf32>
    tpu.vector_store %arg10[%c44, %c0_20], %20 {strides = array<i32>} : memref<56x16xf32, #tpu.memory_space<vmem>>, vector<4x16xf32>,
    %cst_21 = arith.constant 0.000000e+00 : f32
    %22 = vector.broadcast %cst_21 : f32 to vector<4x16xf32>
    %c52 = arith.constant 52 : index
    %c0_22 = arith.constant 0 : index
    %23 = vector.load %arg10[%c52, %c0_22] : memref<56x16xf32, #tpu.memory_space<vmem>>, vector<4x16xf32>
    tpu.vector_store %arg10[%c52, %c0_22], %22 {strides = array<i32>} : memref<56x16xf32, #tpu.memory_space<vmem>>, vector<4x16xf32>,
    %c0_23 = arith.constant 0 : index
    %c122_24 = arith.constant 122 : index
    %24 = vector.load %arg9[%c0_23, %c122_24] : memref<4x272xf32, #tpu.memory_space<vmem>>, vector<4x16xf32>
    %c0_25 = arith.constant 0 : index
    %c0_26 = arith.constant 0 : index
    %25 = vector.load %arg10[%c0_25, %c0_26] : memref<56x16xf32, #tpu.memory_space<vmem>>, vector<4x16xf32>
    tpu.vector_store %arg10[%c0_25, %c0_26], %24 {strides = array<i32>} : memref<56x16xf32, #tpu.memory_space<vmem>>, vector<4x16xf32>,
    %c0_27 = arith.constant 0 : index
    %c124 = arith.constant 124 : index
    %26 = vector.load %arg9[%c0_27, %c124] : memref<4x272xf32, #tpu.memory_space<vmem>>, vector<4x16xf32>
    %c8 = arith.constant 8 : index
    %c0_28 = arith.constant 0 : index
    %27 = vector.load %arg10[%c8, %c0_28] : memref<56x16xf32, #tpu.memory_space<vmem>>, vector<4x16xf32>
    tpu.vector_store %arg10[%c8, %c0_28], %26 {strides = array<i32>} : memref<56x16xf32, #tpu.memory_space<vmem>>, vector<4x16xf32>,
    %c0_29 = arith.constant 0 : index
    %c126 = arith.constant 126 : index
    %28 = vector.load %arg9[%c0_29, %c126] : memref<4x272xf32, #tpu.memory_space<vmem>>, vector<4x16xf32>
    %c16 = arith.constant 16 : index
    %c0_30 = arith.constant 0 : index
    %29 = vector.load %arg10[%c16, %c0_30] : memref<56x16xf32, #tpu.memory_space<vmem>>, vector<4x16xf32>
    tpu.vector_store %arg10[%c16, %c0_30], %28 {strides = array<i32>} : memref<56x16xf32, #tpu.memory_space<vmem>>, vector<4x16xf32>,
    %c0_31 = arith.constant 0 : index
    %c128_32 = arith.constant 128 : index
    %30 = vector.load %arg9[%c0_31, %c128_32] : memref<4x272xf32, #tpu.memory_space<vmem>>, vector<4x16xf32>
    %c24 = arith.constant 24 : index
    %c0_33 = arith.constant 0 : index
    %31 = vector.load %arg10[%c24, %c0_33] : memref<56x16xf32, #tpu.memory_space<vmem>>, vector<4x16xf32>
    tpu.vector_store %arg10[%c24, %c0_33], %30 {strides = array<i32>} : memref<56x16xf32, #tpu.memory_space<vmem>>, vector<4x16xf32>,
    %c0_34 = arith.constant 0 : index
    %c130 = arith.constant 130 : index
    %32 = vector.load %arg9[%c0_34, %c130] : memref<4x272xf32, #tpu.memory_space<vmem>>, vector<4x16xf32>
    %c32 = arith.constant 32 : index
    %c0_35 = arith.constant 0 : index
    %33 = vector.load %arg10[%c32, %c0_35] : memref<56x16xf32, #tpu.memory_space<vmem>>, vector<4x16xf32>
    tpu.vector_store %arg10[%c32, %c0_35], %32 {strides = array<i32>} : memref<56x16xf32, #tpu.memory_space<vmem>>, vector<4x16xf32>,
    %c0_36 = arith.constant 0 : index
    %c132 = arith.constant 132 : index
    %34 = vector.load %arg9[%c0_36, %c132] : memref<4x272xf32, #tpu.memory_space<vmem>>, vector<4x16xf32>
    %c40 = arith.constant 40 : index
    %c0_37 = arith.constant 0 : index
    %35 = vector.load %arg10[%c40, %c0_37] : memref<56x16xf32, #tpu.memory_space<vmem>>, vector<4x16xf32>
    tpu.vector_store %arg10[%c40, %c0_37], %34 {strides = array<i32>} : memref<56x16xf32, #tpu.memory_space<vmem>>, vector<4x16xf32>,
    %c0_38 = arith.constant 0 : index
    %c134 = arith.constant 134 : index
    %36 = vector.load %arg9[%c0_38, %c134] : memref<4x272xf32, #tpu.memory_space<vmem>>, vector<4x16xf32>
    %c48 = arith.constant 48 : index
    %c0_39 = arith.constant 0 : index
    %37 = vector.load %arg10[%c48, %c0_39] : memref<56x16xf32, #tpu.memory_space<vmem>>, vector<4x16xf32>
    tpu.vector_store %arg10[%c48, %c0_39], %36 {strides = array<i32>} : memref<56x16xf32, #tpu.memory_space<vmem>>, vector<4x16xf32>,
    %c0_40 = arith.constant 0 : index
    %c0_41 = arith.constant 0 : index
    %c0_42 = arith.constant 0 : index
    %38 = vector.load %arg4[%c0_40, %c0_41, %c0_42] : memref<1x4x56xf32, #tpu.memory_space<vmem>>, vector<1x4x56xf32>
    %39 = vector.shape_cast %38 : vector<1x4x56xf32> to vector<4x56xf32>
    %c0_43 = arith.constant 0 : index
    %c0_44 = arith.constant 0 : index
    %40 = vector.load %arg10[%c0_43, %c0_44] : memref<56x16xf32, #tpu.memory_space<vmem>>, vector<56x16xf32>
    %cst_45 = arith.constant dense<0.000000e+00> : vector<4x16xf32>
    %41 = tpu.matmul %39, %40, %cst_45 {dimension_numbers = #tpu.dot_dimension_numbers<[1], [0], [0], [1], [0, 0, 1, 1], [], []>} : vector<4x56xf32>, vector<56x16xf32>, vector<4x16xf32> -> vector<4x16xf32>
    %42 = vector.broadcast %9 : vector<4x1xf32> to vector<4x16xf32>
    %43 = arith.addf %41, %42 : vector<4x16xf32>
    %cst_46 = arith.constant 0.000000e+00 : f32
    %44 = vector.broadcast %cst_46 : f32 to vector<4x16xf32>
    %45 = arith.maximumf %43, %44 : vector<4x16xf32>
    %c0_47 = arith.constant 0 : index
    %c0_48 = arith.constant 0 : index
    %46 = vector.load %arg6[%c0_47, %c0_48] : memref<4x4xf32, #tpu.memory_space<vmem>>, vector<4x4xf32>
    %cst_49 = arith.constant dense<0.000000e+00> : vector<4x16xf32>
    %47 = tpu.matmul %46, %45, %cst_49 {dimension_numbers = #tpu.dot_dimension_numbers<[1], [0], [0], [1], [0, 0, 1, 1], [], []>} : vector<4x4xf32>, vector<4x16xf32>, vector<4x16xf32> -> vector<4x16xf32>
    %c0_50 = arith.constant 0 : index
    %c0_51 = arith.constant 0 : index
    %48 = vector.load %arg7[%c0_50, %c0_51] : memref<4x1xf32, #tpu.memory_space<vmem>>, vector<4x1xf32>
    %49 = vector.broadcast %48 : vector<4x1xf32> to vector<4x16xf32>
    %50 = arith.addf %47, %49 : vector<4x16xf32>
    %cst_52 = arith.constant 0.000000e+00 : f32
    %51 = vector.broadcast %cst_52 : f32 to vector<4x16xf32>
    %52 = arith.cmpf ogt, %50, %51 : vector<4x16xf32>
    %cst_53 = arith.constant 0.000000e+00 : f32
    %53 = vector.broadcast %cst_53 : f32 to vector<4x16xf32>
    %54 = arith.minimumf %50, %53 : vector<4x16xf32>
    %55 = math.exp %54 : vector<4x16xf32>
    %cst_54 = arith.constant 1.000000e+00 : f32
    %56 = vector.broadcast %cst_54 : f32 to vector<4x16xf32>
    %57 = arith.subf %55, %56 : vector<4x16xf32>
    %58 = arith.select %52, %50, %57 : vector<4x16xi1>, vector<4x16xf32>
    %c0_55 = arith.constant 0 : index
    %c0_56 = arith.constant 0 : index
    %c0_57 = arith.constant 0 : index
    %59 = vector.load %arg2[%c0_55, %c0_56, %c0_57] : memref<1x4x16xf32, #tpu.memory_space<vmem>>, vector<1x4x16xf32>
    %60 = vector.shape_cast %59 : vector<1x4x16xf32> to vector<4x16xf32>
    %61 = arith.addf %60, %58 : vector<4x16xf32>
    %c0_58 = arith.constant 0 : index
    %c0_59 = arith.constant 0 : index
    %c0_60 = arith.constant 0 : index
    %62 = vector.load %arg8[%c0_58, %c0_59, %c0_60] : memref<1x4x16xf32, #tpu.memory_space<vmem>>, vector<1x4x16xf32>
    %63 = vector.shape_cast %62 : vector<1x4x16xf32> to vector<4x16xf32>
    %64 = vector.shape_cast %61 : vector<4x16xf32> to vector<1x4x16xf32>
    tpu.vector_store %arg8[%c0_58, %c0_59, %c0_60], %64 {strides = array<i32>} : memref<1x4x16xf32, #tpu.memory_space<vmem>>, vector<1x4x16xf32>,
    return
  }
  func.func @transform_0(%arg0: i32, %arg1: i32) -> (i32, i32, i32) {
    %c0_i32 = arith.constant 0 : i32
    %c0_i32_0 = arith.constant 0 : i32
    return %arg0, %c0_i32, %arg1 : i32, i32, i32
  }
  func.func @transform_1(%arg0: i32, %arg1: i32) -> (i32, i32, i32) {
    %c1_i32 = arith.constant 1 : i32
    %0 = arith.muli %arg0, %c1_i32 : i32
    %1 = arith.addi %0, %arg1 : i32
    %c0_i32 = arith.constant 0 : i32
    %c0_i32_0 = arith.constant 0 : i32
    %c0_i32_1 = arith.constant 0 : i32
    return %1, %c0_i32, %c0_i32_0 : i32, i32, i32
  }
  func.func @transform_2(%arg0: i32, %arg1: i32) -> (i32, i32, i32) {
    %c0_i32 = arith.constant 0 : i32
    %c0_i32_0 = arith.constant 0 : i32
    %c0_i32_1 = arith.constant 0 : i32
    %c0_i32_2 = arith.constant 0 : i32
    return %c0_i32, %c0_i32_0, %c0_i32_1 : i32, i32, i32
  }
  func.func @transform_3(%arg0: i32, %arg1: i32) -> (i32, i32) {
    %c0_i32 = arith.constant 0 : i32
    %c0_i32_0 = arith.constant 0 : i32
    %c0_i32_1 = arith.constant 0 : i32
    return %c0_i32, %c0_i32_0 : i32, i32
  }
  func.func @transform_4(%arg0: i32, %arg1: i32) -> (i32, i32) {
    %c0_i32 = arith.constant 0 : i32
    %c0_i32_0 = arith.constant 0 : i32
    %c0_i32_1 = arith.constant 0 : i32
    return %c0_i32, %c0_i32_0 : i32, i32
  }
  func.func @transform_5(%arg0: i32, %arg1: i32) -> (i32, i32) {
    %c0_i32 = arith.constant 0 : i32
    %c0_i32_0 = arith.constant 0 : i32
    %c0_i32_1 = arith.constant 0 : i32
    return %c0_i32, %c0_i32_0 : i32, i32
  }
  func.func @transform_6(%arg0: i32, %arg1: i32) -> (i32, i32, i32) {
    %c0_i32 = arith.constant 0 : i32
    %c0_i32_0 = arith.constant 0 : i32
    return %arg0, %c0_i32, %arg1 : i32, i32, i32
  }
}

</mosaic_0001>

<llo_original>
// kernel: tpu_custom_call.1
$region0: #{tpu_custom_call.1}
  #allocation0 [shape = 'u32[]', space=smem, size = 0x4, offset = 0x4, fixed_abs, tag = 'smem constant byte address 0x4 - core index']
  #allocation1 [shape = 'u32[72,128]{1,0:T(1,128)}', space=vmem, size = 0x9000, scoped, tag = 'internal scratch']
  #allocation2 [shape = 'f32[4,272]{1,0:T(4,128)}', space=vmem, size = 0x1800, scoped, tag = 'scratch operand']
  #allocation3 [shape = 'f32[56,16]{1,0:T(8,128)}', space=vmem, size = 0x7000, scoped, tag = 'scratch operand']
  %s0 = inlined_call_operand.vmem [shape: f32[2,4,16], index: 0, kind: input, shape index: {}]
  %s1 = inlined_call_operand.hbm [shape: f32[2,4,12], index: 1, kind: input, shape index: {}]
  %s2 = inlined_call_operand.hbm [shape: f32[1,4,56], index: 2, kind: input, shape index: {}]
  %s3 = inlined_call_operand.vmem [shape: f32[4,1], index: 3, kind: input, shape index: {}]
  %s4 = inlined_call_operand.vmem [shape: f32[4,4], index: 4, kind: input, shape index: {}]
  %s5 = inlined_call_operand.vmem [shape: f32[4,1], index: 5, kind: input, shape index: {}]
  %s6 = inlined_call_operand.hbm [shape: f32[2,4,16], index: 6, kind: output, shape index: {}]
  %s7 = sld [smem:[#allocation0]]
  $region65: #{tpu_custom_call.1} parent=0
    _
  %s9 = ssub.s32 1, %s7
  %s10 = scalar_select 0, %s9, %s7
  $region1: #{tpu_custom_call.1} parent=0
    #allocation4 [shape = 'u8[4096]{0}', space=vmem, size = 0x1000, scoped, tag = 'input window, operand 1']
    #allocation5 [shape = 's32[2]{0}', space=sflag, size = 0x8, scoped, tag = 'scoped memory for tpu_custom_call.1']
    #allocation6 [shape = 's32[2]{0}', space=sflag, size = 0x8, scoped, tag = 'scoped memory for tpu_custom_call.1']
    #allocation7 [shape = 'u8[2048]{0}', space=vmem, size = 0x800, scoped, tag = 'input window, operand 2, single buffered']
    #allocation8 [shape = 's32[1]{0}', space=sflag, size = 0x4, scoped, tag = 'scoped memory for tpu_custom_call.1']
    #allocation9 [shape = 'u8[4096]{0}', space=vmem, size = 0x1000, scoped, tag = 'output window, operand 0']
    %11 = vsyncpa [#allocation5], 0
    %s12 = scalar_lea.sflag [#allocation5], 1
    %13 = vsyncpa %s12, 0
    %14 = vsyncpa [#allocation8], 0
    %15 = vsyncpa [#allocation6], 0
    %s16 = scalar_lea.sflag [#allocation6], 1
    %17 = vsyncpa %s16, 0
    loop: start=0, step=1, limit=4
    $region2: #{tpu_custom_call.1} parent=1 // loop_pre_header
      _
    $region3: #{tpu_custom_call.1} parent=1 // loop_header
      %s19 = sphi 0, %s23
      %p20 = scmp.ge.s32.totalorder %s19, 4
      %s26 = sphi 0, %s38
      %s27 = sphi 0, %s34
      %s28 = sphi 0, %s26
      %s29 = sphi 0, %s27
      %s30 = sphi 0, %s28
      %s31 = sphi 0, %s29
      %s43 = sphi 0, %s45
      %s46 = sphi 0, %s43
      %s47 = sphi 0, %s46
      %s63 = sphi 0, %s47
      %s71 = sphi 0, %s73
      %s74 = sphi 0, %s71
      %s75 = sphi 0, %s74
      %s91 = sphi 0, %s75
      %s95 = sphi 0, %s95
      %s97 = sphi 0, %s95
      %s98 = sphi 0, %s97
      %s112 = sphi 0, %s98
      %s116 = sphi 0, %s116
      %s118 = sphi 0, %s116
      %s119 = sphi 0, %s118
      %s133 = sphi 0, %s119
      %s137 = sphi 0, %s137
      %s139 = sphi 0, %s137
      %s140 = sphi 0, %s139
      %s154 = sphi 0, %s140
      %s158 = sphi 0, %s158
      %s160 = sphi 0, %s158
      %s161 = sphi 0, %s160
      %s175 = sphi 0, %s161
      %s183 = sphi 0, %s185
      %s186 = sphi 0, %s183
      %s187 = sphi 0, %s186
      %s203 = sphi 0, %s187
    $region4: #{tpu_custom_call.1} parent=1 // loop_header_branch
      %22 = sbr.rel (%p20) target = $region8
    $region5: #{tpu_custom_call.1} parent=1 // loop_body
      %s24 = ssub.s32 %s19, 1
      %s25 = ssub.s32 %s19, 2
      %s32 = sadd.s32 1, %s27
      %p33 = scmp.ge.s32.totalorder %s32, 1
      %s34 = scalar_select %p33, 0, %s32
      %s35 = sadd.s32 1, %s26
      %s36 = scalar_select %p33, %s35, %s26
      %p37 = scmp.ge.s32.totalorder %s36, 2
      %s38 = scalar_select %p37, 0, %s36
      %s39 = ssub.s32 %s26, %s38
      %s40 = ssub.s32 %s27, %s34
      %s41 = sor.u32 %s39, %s40
      %p42 = scmp.eq.s32.totalorder %s41, 0
      %s44 = sadd.s32 %s43, 1
      %s45 = scalar_select %p42, %s43, %s44
      %p48 = pneg %p42
      %p49 = scmp.eq.s32.totalorder %s19, 1
      %p50 = por %p48, %p49
      %p51 = scmp.ne.s32.totalorder %s43, %s46
      %p52 = scmp.eq.s32.totalorder %s19, 0
      %p53 = por %p51, %p52
      %p54 = scmp.ne.s32.totalorder %s43, %s46
      %p55 = scmp.eq.s32.totalorder %s24, 1
      %p56 = por %p54, %p55
      %p57 = scmp.ne.s32.totalorder %s46, %s47
      %p58 = scmp.eq.s32.totalorder %s24, 0
      %p59 = por %p57, %p58
      %p60 = scmp.ne.s32.totalorder %s46, %s47
      %p61 = scmp.eq.s32.totalorder %s25, 1
      %p62 = por %p60, %p61
      %p64 = scmp.ne.s32.totalorder %s47, %s63
      %p65 = scmp.eq.s32.totalorder %s25, 0
      %p66 = por %p64, %p65
      %s67 = sadd.s32 %s26, %s27
      %s68 = sadd.s32 %s38, %s34
      %s69 = ssub.s32 %s67, %s68
      %p70 = scmp.eq.s32.totalorder %s69, 0
      %s72 = sadd.s32 %s71, 1
      %s73 = scalar_select %p70, %s71, %s72
      %p76 = pneg %p70
      %p77 = scmp.eq.s32.totalorder %s19, 1
      %p78 = por %p76, %p77
      %p79 = scmp.ne.s32.totalorder %s71, %s74
      %p80 = scmp.eq.s32.totalorder %s19, 0
      %p81 = por %p79, %p80
      %p82 = scmp.ne.s32.totalorder %s71, %s74
      %p83 = scmp.eq.s32.totalorder %s24, 1
      %p84 = por %p82, %p83
      %p85 = scmp.ne.s32.totalorder %s74, %s75
      %p86 = scmp.eq.s32.totalorder %s24, 0
      %p87 = por %p85, %p86
      %p88 = scmp.ne.s32.totalorder %s74, %s75
      %p89 = scmp.eq.s32.totalorder %s25, 1
      %p90 = por %p88, %p89
      %p92 = scmp.ne.s32.totalorder %s75, %s91
      %p93 = scmp.eq.s32.totalorder %s25, 0
      %p94 = por %p92, %p93
      %s96 = sadd.s32 %s95, 1
      %p99 = scmp.eq.s32.totalorder %s19, 1
      %p100 = scmp.ne.s32.totalorder %s95, %s97
      %p101 = scmp.eq.s32.totalorder %s19, 0
      %p102 = por %p100, %p101
      %p103 = scmp.ne.s32.totalorder %s95, %s97
      %p104 = scmp.eq.s32.totalorder %s24, 1
      %p105 = por %p103, %p104
      %p106 = scmp.ne.s32.totalorder %s97, %s98
      %p107 = scmp.eq.s32.totalorder %s24, 0
      %p108 = por %p106, %p107
      %p109 = scmp.ne.s32.totalorder %s97, %s98
      %p110 = scmp.eq.s32.totalorder %s25, 1
      %p111 = por %p109, %p110
      %p113 = scmp.ne.s32.totalorder %s98, %s112
      %p114 = scmp.eq.s32.totalorder %s25, 0
      %p115 = por %p113, %p114
      %s117 = sadd.s32 %s116, 1
      %p120 = scmp.eq.s32.totalorder %s19, 1
      %p121 = scmp.ne.s32.totalorder %s116, %s118
      %p122 = scmp.eq.s32.totalorder %s19, 0
      %p123 = por %p121, %p122
      %p124 = scmp.ne.s32.totalorder %s116, %s118
      %p125 = scmp.eq.s32.totalorder %s24, 1
      %p126 = por %p124, %p125
      %p127 = scmp.ne.s32.totalorder %s118, %s119
      %p128 = scmp.eq.s32.totalorder %s24, 0
      %p129 = por %p127, %p128
      %p130 = scmp.ne.s32.totalorder %s118, %s119
      %p131 = scmp.eq.s32.totalorder %s25, 1
      %p132 = por %p130, %p131
      %p134 = scmp.ne.s32.totalorder %s119, %s133
      %p135 = scmp.eq.s32.totalorder %s25, 0
      %p136 = por %p134, %p135
      %s138 = sadd.s32 %s137, 1
      %p141 = scmp.eq.s32.totalorder %s19, 1
      %p142 = scmp.ne.s32.totalorder %s137, %s139
      %p143 = scmp.eq.s32.totalorder %s19, 0
      %p144 = por %p142, %p143
      %p145 = scmp.ne.s32.totalorder %s137, %s139
      %p146 = scmp.eq.s32.totalorder %s24, 1
      %p147 = por %p145, %p146
      %p148 = scmp.ne.s32.totalorder %s139, %s140
      %p149 = scmp.eq.s32.totalorder %s24, 0
      %p150 = por %p148, %p149
      %p151 = scmp.ne.s32.totalorder %s139, %s140
      %p152 = scmp.eq.s32.totalorder %s25, 1
      %p153 = por %p151, %p152
      %p155 = scmp.ne.s32.totalorder %s140, %s154
      %p156 = scmp.eq.s32.totalorder %s25, 0
      %p157 = por %p155, %p156
      %s159 = sadd.s32 %s158, 1
      %p162 = scmp.eq.s32.totalorder %s19, 1
      %p163 = scmp.ne.s32.totalorder %s158, %s160
      %p164 = scmp.eq.s32.totalorder %s19, 0
      %p165 = por %p163, %p164
      %p166 = scmp.ne.s32.totalorder %s158, %s160
      %p167 = scmp.eq.s32.totalorder %s24, 1
      %p168 = por %p166, %p167
      %p169 = scmp.ne.s32.totalorder %s160, %s161
      %p170 = scmp.eq.s32.totalorder %s24, 0
      %p171 = por %p169, %p170
      %p172 = scmp.ne.s32.totalorder %s160, %s161
      %p173 = scmp.eq.s32.totalorder %s25, 1
      %p174 = por %p172, %p173
      %p176 = scmp.ne.s32.totalorder %s161, %s175
      %p177 = scmp.eq.s32.totalorder %s25, 0
      %p178 = por %p176, %p177
      %s179 = ssub.s32 %s26, %s38
      %s180 = ssub.s32 %s27, %s34
      %s181 = sor.u32 %s179, %s180
      %p182 = scmp.eq.s32.totalorder %s181, 0
      %s184 = sadd.s32 %s183, 1
      %s185 = scalar_select %p182, %s183, %s184
      %p188 = pneg %p182
      %p189 = scmp.eq.s32.totalorder %s19, 1
      %p190 = por %p188, %p189
      %p191 = scmp.ne.s32.totalorder %s183, %s186
      %p192 = scmp.eq.s32.totalorder %s19, 0
      %p193 = por %p191, %p192
      %p194 = scmp.ne.s32.totalorder %s183, %s186
      %p195 = scmp.eq.s32.totalorder %s24, 1
      %p196 = por %p194, %p195
      %p197 = scmp.ne.s32.totalorder %s186, %s187
      %p198 = scmp.eq.s32.totalorder %s24, 0
      %p199 = por %p197, %p198
      %p200 = scmp.ne.s32.totalorder %s186, %s187
      %p201 = scmp.eq.s32.totalorder %s25, 1
      %p202 = por %p200, %p201
      %p204 = scmp.ne.s32.totalorder %s187, %s203
      %p205 = scmp.eq.s32.totalorder %s25, 0
      %p206 = por %p204, %p205
      %p207 = scmp.le.s32.totalorder 1, %s19
      %p208 = scmp.lt.s32.totalorder %s19, 3
      %p209 = pnand %p207, %p208
      %p210 = pneg %p209
      // Predicated region
      $region9: #{tpu_custom_call.1} parent=5 // pred_check
        _
      $region10: #{tpu_custom_call.1} parent=5 // pred_check_branch
        %212 = sbr.rel (%p209) target = $region12
      $region11: #{tpu_custom_call.1} parent=5 // pred_region
        %s213 = ssub.s32 %s19, 1
        // Predicated region
        $region13: #{tpu_custom_call.1} parent=11 // pred_check
          %p214 = pneg %p108
        $region14: #{tpu_custom_call.1} parent=11 // pred_check_branch
          %216 = sbr.rel (%p214) target = $region16
        $region15: #{tpu_custom_call.1} parent=11 // pred_region
          %218 = vsyncadd [#allocation8], 0
          %s220 = sshll.u32 %s2, 4
          %s221 = int_to_ptr.hbm [resolvable:$true] %s220
          %s222 = sshll.u32 [#allocation7], 4
          %s223 = int_to_ptr.vmem [resolvable:$true] %s222
          %225 = dma.hbm_to_vmem [thread:$0]  %s221, 64, %s223, [#allocation8]
        $region16: #{tpu_custom_call.1} parent=11 // pred_fallthru
          _
        // Predicated region
        $region17: #{tpu_custom_call.1} parent=11 // pred_check
          %p226 = pneg %p129
        $region18: #{tpu_custom_call.1} parent=11 // pred_check_branch
          %228 = sbr.rel (%p226) target = $region20
        $region19: #{tpu_custom_call.1} parent=11 // pred_region
          _
        $region20: #{tpu_custom_call.1} parent=11 // pred_fallthru
          _
        // Predicated region
        $region21: #{tpu_custom_call.1} parent=11 // pred_check
          %p229 = pneg %p150
        $region22: #{tpu_custom_call.1} parent=11 // pred_check_branch
          %231 = sbr.rel (%p229) target = $region24
        $region23: #{tpu_custom_call.1} parent=11 // pred_region
          _
        $region24: #{tpu_custom_call.1} parent=11 // pred_fallthru
          _
        // Predicated region
        $region25: #{tpu_custom_call.1} parent=11 // pred_check
          %p232 = pneg %p171
        $region26: #{tpu_custom_call.1} parent=11 // pred_check_branch
          %234 = sbr.rel (%p232) target = $region28
        $region27: #{tpu_custom_call.1} parent=11 // pred_region
          _
        $region28: #{tpu_custom_call.1} parent=11 // pred_fallthru
          _
      $region12: #{tpu_custom_call.1} parent=5 // pred_fallthru
        _
      %p235 = scmp.lt.s32.totalorder %s19, 2
      // Predicated region
      $region29: #{tpu_custom_call.1} parent=5 // pred_check
        %p236 = pneg %p235
      $region30: #{tpu_custom_call.1} parent=5 // pred_check_branch
        %238 = sbr.rel (%p236) target = $region32
      $region31: #{tpu_custom_call.1} parent=5 // pred_region
        // Predicated region
        $region33: #{tpu_custom_call.1} parent=31 // pred_check
          %p239 = pneg %p53
        $region34: #{tpu_custom_call.1} parent=31 // pred_check_branch
          %241 = sbr.rel (%p239) target = $region36
        $region35: #{tpu_custom_call.1} parent=31 // pred_region
          %p242 = scmp.lt.s32.totalorder %s26, 1
          %s243 = scalar_select %p242, %s26, 1
          %p244 = scmp.lt.s32.totalorder %s27, 0
          %s245 = scalar_select %p244, %s27, 0
          %s246 = sadd.s32 %s245, %s243
          %s247 = smul.addr %s246, 4
          %s248 = scalar_lea.vmem %s0, %s247
        $region36: #{tpu_custom_call.1} parent=31 // pred_fallthru
          _
        // Predicated region
        $region37: #{tpu_custom_call.1} parent=31 // pred_check
          %p249 = pneg %p81
        $region38: #{tpu_custom_call.1} parent=31 // pred_check_branch
          %251 = sbr.rel (%p249) target = $region40
        $region39: #{tpu_custom_call.1} parent=31 // pred_region
          %s252 = sand.u32 %s71, 1
          %s253 = scalar_lea.sflag [#allocation5], %s252
          %s254 = sand.u32 %s71, 1
          %s255 = smul.addr %s254, 4
          %s256 = scalar_lea.vmem [#allocation4], %s255
          %s257 = sadd.s32 %s26, %s27
          %259 = vsyncadd %s253, 0
          %s260 = smul.addr %s257, 4
          %s261 = scalar_lea.hbm %s1, %s260
          %s263 = sshll.u32 %s261, 4
          %s264 = int_to_ptr.hbm [resolvable:$true] %s263
          %s265 = sshll.u32 %s256, 4
          %s266 = int_to_ptr.vmem [resolvable:$true] %s265
          %268 = dma.hbm_to_vmem [thread:$0]  %s264, 64, %s266, %s253
        $region40: #{tpu_custom_call.1} parent=31 // pred_fallthru
          _
      $region32: #{tpu_custom_call.1} parent=5 // pred_fallthru
        _
      %p269 = scmp.le.s32.totalorder 1, %s19
      %p270 = scmp.lt.s32.totalorder %s19, 3
      %p271 = pnand %p269, %p270
      %p272 = pneg %p271
      // Predicated region
      $region41: #{tpu_custom_call.1} parent=5 // pred_check
        _
      $region42: #{tpu_custom_call.1} parent=5 // pred_check_branch
        %274 = sbr.rel (%p271) target = $region44
      $region43: #{tpu_custom_call.1} parent=5 // pred_region
        %s275 = ssub.s32 %s19, 1
        %s276 = sand.u32 %s74, 1
        %s277 = scalar_lea.sflag [#allocation5], %s276
        %s278 = sand.u32 %s74, 1
        %s279 = smul.addr %s278, 4
        %s280 = scalar_lea.vmem [#allocation4], %s279
        // Predicated region
        $region45: #{tpu_custom_call.1} parent=43 // pred_check
          %p281 = pneg %p87
        $region46: #{tpu_custom_call.1} parent=43 // pred_check_branch
          %283 = sbr.rel (%p281) target = $region48
        $region47: #{tpu_custom_call.1} parent=43 // pred_region
          %285 = dma.done %s277, 64
        $region48: #{tpu_custom_call.1} parent=43 // pred_fallthru
          _
        // Predicated region
        $region49: #{tpu_custom_call.1} parent=43 // pred_check
          %p286 = pneg %p108
        $region50: #{tpu_custom_call.1} parent=43 // pred_check_branch
          %288 = sbr.rel (%p286) target = $region52
        $region51: #{tpu_custom_call.1} parent=43 // pred_region
          %290 = dma.done [#allocation8], 64
        $region52: #{tpu_custom_call.1} parent=43 // pred_fallthru
          _
        %p291 = scmp.lt.s32.totalorder %s28, 1
        %s292 = scalar_select %p291, %s28, 1
        %p293 = scmp.lt.s32.totalorder %s29, 0
        %s294 = scalar_select %p293, %s29, 0
        %s295 = sadd.s32 %s294, %s292
        %s296 = smul.addr %s295, 4
        %s297 = scalar_lea.vmem %s0, %s296
        %p298 = pneg %p59
        %p299 = pneg %p56
        %s300 = sand.u32 %s74, 1
        %s301 = scalar_lea.sflag [#allocation5], %s300
        %s302 = sand.u32 %s74, 1
        %s303 = smul.addr %s302, 4
        %s304 = scalar_lea.vmem [#allocation4], %s303
        %p305 = pneg %p87
        %p306 = pneg %p84
        %p307 = pneg %p108
        %p308 = pneg %p105
        %p309 = pneg %p129
        %p310 = pneg %p126
        %p311 = pneg %p150
        %p312 = pneg %p147
        %p313 = pneg %p171
        %p314 = pneg %p168
        %p315 = pneg %p199
        %p316 = pneg %p196
        %s317 = sand.u32 %s186, 1
        %s318 = scalar_lea.sflag [#allocation6], %s317
        %s319 = sand.u32 %s186, 1
        %s320 = smul.addr %s319, 4
        %s321 = scalar_lea.vmem [#allocation9], %s320
        %p322 = scmp.lt.s32.totalorder %s28, 1
        %s323 = scalar_select %p322, %s28, 1
        %p324 = scmp.lt.s32.totalorder %s29, 0
        %s325 = scalar_select %p324, %s29, 0
        %s326 = sadd.s32 %s325, %s323
        %s327 = smul.addr %s326, 4
        %s328 = scalar_lea.vmem %s0, %s327
        %s329 = sadd.s32 %s28, %s29
        %v330 = vld [vmem:[%s328] sm:$0xf]
        %vm331 = vcmask 125952
        %332 = vst.msk [vmem:[#allocation2 + $0x4] sm:$0xf] %vm331, %v330
        %v333 = vld [vmem:[%s280] sm:$0xf]
        %335 = vrot.lane.b32.xlu0 %v333, 122
        %v336 = vpop.permute.xlu0 %335
        %vm338 = vcmask 1044432
        %339 = vst.msk [vmem:[#allocation2] sm:$0xf] %vm338, %v336
        %340 = vrot.lane.b32.xlu0 %v333, 10
        %v341 = vpop.permute.xlu0 %340
        %vm343 = vcmask 175232
        %344 = vst.msk [vmem:[#allocation2 + $0x4] sm:$0xf] %vm343, %v341
        %v345 = vld [vmem:[%s3] sm:$0xf]
        %346 = vst.msk [vmem:[#allocation3 + $0x4] sm:$0xf] %vm331, 0.0
        %347 = vst.msk [vmem:[#allocation3 + $0xc] sm:$0xf] %vm331, 0.0
        %348 = vst.msk [vmem:[#allocation3 + $0x14] sm:$0xf] %vm331, 0.0
        %349 = vst.msk [vmem:[#allocation3 + $0x1c] sm:$0xf] %vm331, 0.0
        %350 = vst.msk [vmem:[#allocation3 + $0x24] sm:$0xf] %vm331, 0.0
        %351 = vst.msk [vmem:[#allocation3 + $0x2c] sm:$0xf] %vm331, 0.0
        %352 = vst.msk [vmem:[#allocation3 + $0x34] sm:$0xf] %vm331, 0.0
        %v353 = vld [vmem:[#allocation2] sm:$0xff]
        %355 = vst [vmem:[#allocation1] ss:$2 sm:$0xff] %v353
        %v356 = vld.sshfl [vmem:[#allocation1] sm:$0xff pattern:$0x75316420]
        %v357 = vld.sshfl [vmem:[#allocation1 + $0x8] sm:$0xff pattern:$0x75316420]
        %358 = vrot.lane.b32.xlu0 %v356, 6
        %v359 = vpop.permute.xlu0 %358
        %360 = vrot.lane.b32.xlu0 %v357, 6
        %v361 = vpop.permute.xlu0 %360
        %vm362 = vcmask 48128
        %v363 = vsel %vm362, %v359, %v361
        %365 = vst.msk [vmem:[#allocation3] sm:$0xf] %vm331, %v363
        %v366 = vld [vmem:[#allocation2] sm:$0xff]
        %368 = vst [vmem:[#allocation1] ss:$2 sm:$0xff] %v366
        %v369 = vld.sshfl [vmem:[#allocation1] sm:$0xff pattern:$0x75316420]
        %v370 = vld.sshfl [vmem:[#allocation1 + $0x8] sm:$0xff pattern:$0x75316420]
        %371 = vrot.lane.b32.xlu0 %v369, 4
        %v372 = vpop.permute.xlu0 %371
        %373 = vrot.lane.b32.xlu0 %v370, 4
        %v374 = vpop.permute.xlu0 %373
        %vm375 = vcmask 31744
        %v376 = vsel %vm375, %v372, %v374
        %378 = vst.msk [vmem:[#allocation3 + $0x8] sm:$0xf] %vm331, %v376
        %v379 = vld [vmem:[#allocation2] sm:$0xff]
        %381 = vst [vmem:[#allocation1] ss:$2 sm:$0xff] %v379
        %v382 = vld.sshfl [vmem:[#allocation1] sm:$0xff pattern:$0x75316420]
        %v383 = vld.sshfl [vmem:[#allocation1 + $0x8] sm:$0xff pattern:$0x75316420]
        %384 = vrot.lane.b32.xlu0 %v382, 2
        %v385 = vpop.permute.xlu0 %384
        %386 = vrot.lane.b32.xlu0 %v383, 2
        %v387 = vpop.permute.xlu0 %386
        %vm388 = vcmask 15360
        %v389 = vsel %vm388, %v385, %v387
        %391 = vst.msk [vmem:[#allocation3 + $0x10] sm:$0xf] %vm331, %v389
        %v392 = vld [vmem:[#allocation2 + $0x4] sm:$0xf]
        %393 = vst.msk [vmem:[#allocation3 + $0x18] sm:$0xf] %vm331, %v392
        %v394 = vld [vmem:[#allocation2 + $0x4] sm:$0xf]
        %396 = vst [vmem:[#allocation1] ss:$2 sm:$0xff] %v394
        %v397 = vld.sshfl [vmem:[#allocation1] sm:$0xff pattern:$0x75316420]
        %398 = vrot.lane.b32.xlu0 %v397, 126
        %v399 = vpop.permute.xlu0 %398
        %401 = vst.msk [vmem:[#allocation3 + $0x20] sm:$0xf] %vm331, %v399
        %v402 = vld [vmem:[#allocation2 + $0x4] sm:$0xf]
        %404 = vst [vmem:[#allocation1] ss:$2 sm:$0xff] %v402
        %v405 = vld.sshfl [vmem:[#allocation1] sm:$0xff pattern:$0x75316420]
        %406 = vrot.lane.b32.xlu0 %v405, 124
        %v407 = vpop.permute.xlu0 %406
        %409 = vst.msk [vmem:[#allocation3 + $0x28] sm:$0xf] %vm331, %v407
        %v410 = vld [vmem:[#allocation2 + $0x4] sm:$0xf]
        %412 = vst [vmem:[#allocation1] ss:$2 sm:$0xff] %v410
        %v413 = vld.sshfl [vmem:[#allocation1] sm:$0xff pattern:$0x75316420]
        %414 = vrot.lane.b32.xlu0 %v413, 122
        %v415 = vpop.permute.xlu0 %414
        %417 = vst.msk [vmem:[#allocation3 + $0x30] sm:$0xf] %vm331, %v415
        %v418 = vld [vmem:[#allocation7] sm:$0xf]
        %v419 = vld [vmem:[#allocation3] sm:$0xff]
        %v420 = vld [vmem:[#allocation3 + $0x8] sm:$0xff]
        %v421 = vld [vmem:[#allocation3 + $0x10] sm:$0xff]
        %v422 = vld [vmem:[#allocation3 + $0x18] sm:$0xff]
        %v423 = vld [vmem:[#allocation3 + $0x20] sm:$0xff]
        %v424 = vld [vmem:[#allocation3 + $0x28] sm:$0xff]
        %v425 = vld [vmem:[#allocation3 + $0x30] sm:$0xff]
        %427 = vset.pattern.permute.xlu0 0
        %428 = vperm.xlu0 %427, %v345
        %v429 = vpop.permute.xlu0 %428
        %vm431 = vcmask 457728
        %v433 = vsel %vm431, %v418, 0
        %435 = vmatpush.msra.mxu0 0.0
        %436 = vmatpush.msra.mxu0 0.0
        %437 = vmatpush.msra.mxu0 0.0
        %438 = vmatpush.msra.mxu0 0.0
        %439 = vmatpush.msra.mxu0 0.0
        %440 = vmatpush.msra.mxu0 0.0
        %441 = vmatpush.msra.mxu0 0.0
        %442 = vmatpush.msra.mxu0 0.0
        %443 = vmatpush.msra.mxu0 0.0
        %444 = vmatpush.msra.mxu0 %v425
        %445 = vmatpush.msra.mxu0 %v424
        %446 = vmatpush.msra.mxu0 %v423
        %447 = vmatpush.msra.mxu0 %v422
        %448 = vmatpush.msra.mxu0 %v421
        %449 = vmatpush.msra.mxu0 %v420
        %450 = vmatpush.msra.mxu0 %v419
        %451 = vmatmul.f32.gmra.mxu0 %v433
        %v452 = vpop.f32.mrf.mxu0
        %v453 = vadd.f32 %v429, %v452
        %454 = vdwg.mxu0
        %v455 = vmax.f32 %v453, 0.0
        %v456 = vld [vmem:[%s4] sm:$0xf]
        %v457 = vld [vmem:[%s5] sm:$0xf]
        %459 = vset.pattern.permute.xlu0 0
        %460 = vperm.xlu0 %459, %v457
        %v461 = vpop.permute.xlu0 %460
        %v464 = vsel %vm375, %v456, 0
        %vm466 = vcmask 1043456
        %v468 = vsel %vm466, %v455, 0
        %470 = vmatpush.msra.mxu0 0.0
        %471 = vmatpush.msra.mxu0 0.0
        %472 = vmatpush.msra.mxu0 0.0
        %473 = vmatpush.msra.mxu0 0.0
        %474 = vmatpush.msra.mxu0 0.0
        %475 = vmatpush.msra.mxu0 0.0
        %476 = vmatpush.msra.mxu0 0.0
        %477 = vmatpush.msra.mxu0 0.0
        %478 = vmatpush.msra.mxu0 0.0
        %479 = vmatpush.msra.mxu0 0.0
        %480 = vmatpush.msra.mxu0 0.0
        %481 = vmatpush.msra.mxu0 0.0
        %482 = vmatpush.msra.mxu0 0.0
        %483 = vmatpush.msra.mxu0 0.0
        %484 = vmatpush.msra.mxu0 0.0
        %485 = vmatpush.msra.mxu0 %v468
        %486 = vmatmul.f32.gmra.mxu0 %v464
        %v487 = vpop.f32.mrf.mxu0
        %v488 = vadd.f32 %v461, %v487
        %489 = vdwg.mxu0
        %vm490 = vcmp.gt.f32.partialorder %v488, 0.0
        %v491 = vmin.f32 %v488, 0.0
        %v492 = vmul.f32 %v491, 1.442695
        %v493 = vpow.pop %v492
        %v494 = vsub.f32 %v493, 1.0
        %v495 = vsel %vm490, %v488, %v494
        %v496 = vld [vmem:[%s328] sm:$0xf]
        %v497 = vadd.f32 %v496, %v495
        %498 = vst.msk [vmem:[%s321] sm:$0xf] %vm331, %v497
        %s499 = sand.u32 %s186, 1
        %s500 = scalar_lea.sflag [#allocation6], %s499
        %s501 = sand.u32 %s186, 1
        %s502 = smul.addr %s501, 4
        %s503 = scalar_lea.vmem [#allocation9], %s502
        // Predicated region
        $region53: #{tpu_custom_call.1} parent=43 // pred_check
          %p504 = pneg %p196
        $region54: #{tpu_custom_call.1} parent=43 // pred_check_branch
          %506 = sbr.rel (%p504) target = $region56
        $region55: #{tpu_custom_call.1} parent=43 // pred_region
          %508 = vsyncadd %s500, 0
          %s509 = sadd.s32 %s29, %s28
          %s510 = smul.addr %s509, 4
          %s511 = scalar_lea.hbm %s6, %s510
          %s513 = sshll.u32 %s503, 4
          %s514 = int_to_ptr.vmem [resolvable:$true] %s513
          %s515 = sshll.u32 %s511, 4
          %s516 = int_to_ptr.hbm [resolvable:$true] %s515
          %518 = dma.vmem_to_hbm [thread:$0]  %s514, 64, %s516, %s500
        $region56: #{tpu_custom_call.1} parent=43 // pred_fallthru
          _
      $region44: #{tpu_custom_call.1} parent=5 // pred_fallthru
        _
      %p519 = scmp.le.s32.totalorder 2, %s19
      // Predicated region
      $region57: #{tpu_custom_call.1} parent=5 // pred_check
        %p520 = pneg %p519
      $region58: #{tpu_custom_call.1} parent=5 // pred_check_branch
        %522 = sbr.rel (%p520) target = $region60
      $region59: #{tpu_custom_call.1} parent=5 // pred_region
        %s523 = ssub.s32 %s19, 2
        // Predicated region
        $region61: #{tpu_custom_call.1} parent=59 // pred_check
          %p524 = pneg %p202
        $region62: #{tpu_custom_call.1} parent=59 // pred_check_branch
          %526 = sbr.rel (%p524) target = $region64
        $region63: #{tpu_custom_call.1} parent=59 // pred_region
          %s527 = sand.u32 %s187, 1
          %s528 = scalar_lea.sflag [#allocation6], %s527
          %s529 = sand.u32 %s187, 1
          %s530 = smul.addr %s529, 4
          %s531 = scalar_lea.vmem [#allocation9], %s530
          %533 = dma.done %s528, 64
        $region64: #{tpu_custom_call.1} parent=59 // pred_fallthru
          _
      $region60: #{tpu_custom_call.1} parent=5 // pred_fallthru
        _
    $region6: #{tpu_custom_call.1} parent=1 // loop_footer
      %s23 = sadd.s32 1, %s19
    $region7: #{tpu_custom_call.1} parent=1 // loop_footer_branch
      %18 = sbr.rel target = $region3
    $region8: #{tpu_custom_call.1} parent=1 // loop_exit
      _
    %534 = vsyncpa [#allocation5], 1
    %s535 = scalar_lea.sflag [#allocation5], 1
    %536 = vsyncpa %s535, 1
    %537 = vsyncpa [#allocation8], 1
    %538 = vsyncpa [#allocation6], 1
    %s539 = scalar_lea.sflag [#allocation6], 1
    %540 = vsyncpa %s539, 1

</llo_original>
